<compile_context>
chip_gen: v6e
topology: v6e:2x2x1
jax: 0.10.0
libtpu: 0.0.40
codegen_flags: <defaults>
</compile_context>

<pallas_src>
import functools

import jax
import jax.numpy as jnp
from jax import lax
from jax.experimental import pallas as pl
from jax.experimental.pallas import tpu as pltpu


def _act(name, x):
    if name == "relu":
        return jnp.maximum(x, 0.0)
    if name == "gelu":
        # PyTorch nn.GELU / transformers ACT2FN["gelu"] default to the exact erf form.
        return jax.nn.gelu(x, approximate=False)
    if name in ("gelu_new", "gelu_pytorch_tanh"):
        return jax.nn.gelu(x, approximate=True)
    if name == "tanh":
        return jnp.tanh(x)
    raise ValueError(f"unsupported act_fn_name: {name}")


def _round_up(x, m):
    return ((x + m - 1) // m) * m


def _round_down(x, m):
    return (x // m) * m


def residual_block_kernel(
    x_ref, w_cat_ref, b_cat_ref, w_o_ref, ln_ref, o_ref,
    *, h_pad: int, out_dim: int, act_fn_name: str, use_layer_norm: bool, eps: float,
):
    # Fused first matmul: x @ [W_hidden | W_residual] ; operands stay in native
    # dtype (bf16 streams at half the HBM bytes), accumulation is f32 on the MXU.
    xw = jnp.dot(x_ref[...], w_cat_ref[...], preferred_element_type=jnp.float32)
    xw = xw + b_cat_ref[...]                      # f32 fused bias [b_h | b_o + b_r]

    # h_pad % 128 == 0 -> both slices are lane-aligned (free views, no relayout).
    hid = _act(act_fn_name, xw[:, :h_pad])        # hidden branch + activation
    res = xw[:, h_pad:]                           # residual branch (+ b_o + b_r), f32

    # output_layer: hid @ W_output  (dropout_p = 0.0 -> identity), then residual add.
    out = jnp.dot(
        hid.astype(w_o_ref.dtype), w_o_ref[...], preferred_element_type=jnp.float32
    ) + res

    if use_layer_norm:
        # T5LayerNorm (RMS, no mean subtraction). Padded lanes are exactly zero,
        # so the sum over the padded axis equals the sum over the true out_dim.
        ssq = jnp.sum(out * out, axis=-1, keepdims=True)
        out = out * lax.rsqrt(ssq * (1.0 / out_dim) + eps)
        out = out * ln_ref[...]                   # f32 LN weight, (1, o_pad)

    o_ref[...] = out.astype(o_ref.dtype)


def residual_block(
    x, w_h, b_h, w_o, b_o, w_r, b_r, ln_w=None,
    *, act_fn_name="relu", use_layer_norm=True, eps=1e-6, row_tile=None,
):
    """x: [batch, seq, in_dim]. Weights are [in, out] (pre-transposed), biases [out]."""
    batch, seq, in_dim = x.shape
    h_dim = w_h.shape[1]
    out_dim = w_o.shape[1]
    rows = batch * seq
    itemsize = jnp.dtype(x.dtype).itemsize
    dt = x.dtype

    # ---- lane-align the hidden/residual split and the output (128-lane dense) ----
    h_pad = _round_up(h_dim, 128)
    o_pad = _round_up(out_dim, 128)
    cat_dim = h_pad + o_pad

    w_h_p = jnp.pad(w_h.astype(dt), ((0, 0), (0, h_pad - h_dim)))
    w_r_p = jnp.pad(w_r.astype(dt), ((0, 0), (0, o_pad - out_dim)))
    w_cat = jnp.concatenate([w_h_p, w_r_p], axis=1)                   # (in_dim, cat_dim)
    w_o_p = jnp.pad(w_o.astype(dt), ((0, h_pad - h_dim), (0, o_pad - out_dim)))

    b_h_p = jnp.pad(b_h.astype(jnp.float32), (0, h_pad - h_dim))
    b_or_p = jnp.pad(b_o.astype(jnp.float32) + b_r.astype(jnp.float32),
                     (0, o_pad - out_dim))
    b_cat = jnp.concatenate([b_h_p, b_or_p]).reshape(1, cat_dim)      # f32 (1, cat_dim)

    if ln_w is None:
        ln_w = jnp.ones((out_dim,), dtype=jnp.float32)
    ln_p = jnp.pad(ln_w.astype(jnp.float32), (0, o_pad - out_dim)).reshape(1, o_pad)

    # ---- generation-aware VMEM budget ----
    try:
        vmem_cap = int(pltpu.get_tpu_info().vmem_capacity_bytes)
    except Exception:
        vmem_cap = 64 << 20                      # conservative (v7x per-TC)
    if vmem_cap <= (64 << 20):                   # v7x: leave headroom under 64 MiB
        vmem_limit_cap = 48 << 20
        tile_budget = 12 << 20
    else:                                        # v5e / v6e: 128 MiB -> bigger tiles
        vmem_limit_cap = 96 << 20
        tile_budget = 32 << 20

    # ---- row tile selection (sublane-packing aligned, MXU-friendly, >=2 steps) ----
    row_align = 8 if itemsize >= 4 else (16 if itemsize == 2 else 32)
    if row_tile is None:
        per_row_bytes = (
            2 * (in_dim + o_pad) * itemsize      # double-buffered x + out blocks
            + (cat_dim + 2 * o_pad) * 4          # f32 intermediates (xw, out, res)
        )
        row_tile = tile_budget // max(per_row_bytes, 1)
        row_tile = max(row_align, min(2048, _round_down(row_tile, row_align)))
        if row_tile >= 512:
            row_tile = _round_down(row_tile, 256)
    else:
        row_tile = max(row_align, _round_down(int(row_tile), row_align))

    rows_ru = _round_up(rows, row_align)
    if rows_ru >= 2 * row_align:                 # keep >=2 grid steps when possible
        row_tile = min(row_tile, max(row_align, _round_down(rows_ru // 2, row_align)))
    row_tile = int(min(row_tile, rows_ru))
    rows_padded = _round_up(rows, row_tile)

    x2d = x.reshape(rows, in_dim)
    if rows_padded != rows:
        x2d = jnp.pad(x2d, ((0, rows_padded - rows), (0, 0)))

    kernel = functools.partial(
        residual_block_kernel,
        h_pad=h_pad, out_dim=out_dim, act_fn_name=act_fn_name,
        use_layer_norm=use_layer_norm, eps=float(eps),
    )

    # ---- explicit VMEM limit + cost estimate ----
    weight_bytes = (in_dim * cat_dim + h_pad * o_pad) * itemsize + (cat_dim + o_pad) * 4
    est = (
        2 * row_tile * (in_dim + o_pad) * itemsize   # double-buffered x / out blocks
        + 2 * weight_bytes                           # worst case: double-buffered weights
        + row_tile * (cat_dim + 2 * o_pad) * 4       # f32 intermediates
    )
    vmem_limit = int(min(max(2 * est + (4 << 20), 16 << 20), vmem_limit_cap))

    cost = pl.CostEstimate(
        flops=int(2 * rows_padded * (in_dim * cat_dim + h_pad * o_pad)),
        transcendentals=int(rows_padded if use_layer_norm else 0),
        bytes_accessed=int(rows_padded * (in_dim + o_pad) * itemsize + weight_bytes),
    )

    grid = (rows_padded // row_tile,)
    _const = lambda i: (0, 0)

    def _run(single_buffer_weights):
        wkw = {"pipeline_mode": pl.Buffered(1)} if single_buffer_weights else {}
        in_specs = [
            pl.BlockSpec((row_tile, in_dim), lambda i: (i, 0)),        # x rows
            pl.BlockSpec((in_dim, cat_dim), _const, **wkw),            # [W_h | W_r]
            pl.BlockSpec((1, cat_dim), _const, **wkw),                 # [b_h | b_o+b_r]
            pl.BlockSpec((h_pad, o_pad), _const, **wkw),               # W_output
            pl.BlockSpec((1, o_pad), _const, **wkw),                   # LN weight
        ]
        return pl.pallas_call(
            kernel,
            out_shape=jax.ShapeDtypeStruct((rows_padded, o_pad), x.dtype),
            grid_spec=pltpu.PrefetchScalarGridSpec(
                num_scalar_prefetch=0,
                grid=grid,
                in_specs=in_specs,
                out_specs=pl.BlockSpec((row_tile, o_pad), lambda i: (i, 0)),
            ),
            compiler_params=pltpu.CompilerParams(
                dimension_semantics=("parallel",),
                vmem_limit_bytes=vmem_limit,
            ),
            cost_estimate=cost,
        )(x2d, w_cat, b_cat, w_o_p, ln_p)

    try:
        out2d = _run(True)       # constant weight blocks single-buffered
    except Exception:
        out2d = _run(False)      # fallback if Buffered(1) is rejected by this jax build

    out2d = out2d[:rows, :out_dim]
    return out2d.reshape(batch, seq, out_dim)


def reference_residual_block(x, w_h, b_h, w_o, b_o, w_r, b_r, ln_w=None,
                             act_fn_name="relu", use_layer_norm=True, eps=1e-6):
    xf = x.astype(jnp.float32)
    hid = _act(act_fn_name, xf @ w_h.astype(jnp.float32) + b_h.astype(jnp.float32))
    out = hid @ w_o.astype(jnp.float32) + b_o.astype(jnp.float32)
    res = xf @ w_r.astype(jnp.float32) + b_r.astype(jnp.float32)
    out = out + res
    if use_layer_norm:
        if ln_w is None:
            ln_w = jnp.ones((out.shape[-1],), dtype=jnp.float32)
        var = jnp.mean(out * out, axis=-1, keepdims=True)
        out = out * lax.rsqrt(var + eps) * ln_w.astype(jnp.float32)
    return out.astype(x.dtype)


if __name__ == "__main__":
    key = jax.random.PRNGKey(0)

    # ---- Test 1: small shapes consistent with the module, f32, layer norm on ----
    batch, seq, in_dim, h_dim, out_dim = 2, 8, 32, 64, 32
    ks = jax.random.split(key, 8)
    x = jax.random.normal(ks[0], (batch, seq, in_dim), dtype=jnp.float32)
    w_h = jax.random.normal(ks[1], (in_dim, h_dim), dtype=jnp.float32) * 0.05
    b_h = jax.random.normal(ks[2], (h_dim,), dtype=jnp.float32) * 0.05
    w_o = jax.random.normal(ks[3], (h_dim, out_dim), dtype=jnp.float32) * 0.05
    b_o = jax.random.normal(ks[4], (out_dim,), dtype=jnp.float32) * 0.05
    w_r = jax.random.normal(ks[5], (in_dim, out_dim), dtype=jnp.float32) * 0.05
    b_r = jax.random.normal(ks[6], (out_dim,), dtype=jnp.float32) * 0.05
    ln_w = jnp.ones((out_dim,), dtype=jnp.float32)  # T5LayerNorm weight init = ones

    out = residual_block(x, w_h, b_h, w_o, b_o, w_r, b_r, ln_w,
                         act_fn_name="relu", use_layer_norm=True)
    out = jax.block_until_ready(out)
    ref = reference_residual_block(x, w_h, b_h, w_o, b_o, w_r, b_r, ln_w,
                                   act_fn_name="relu", use_layer_norm=True)
    assert out.shape == (batch, seq, out_dim)
    assert jnp.allclose(out, ref, atol=1e-5, rtol=1e-5)

    # ---- Test 2: ragged row count + forced small row tile -> multi-step grid
    #      (exercises padding, pipelined tiles, no layer norm, gelu) ----
    batch2, seq2 = 3, 37
    x2 = jax.random.normal(ks[7], (batch2, seq2, in_dim), dtype=jnp.float32)
    out2 = residual_block(x2, w_h, b_h, w_o, b_o, w_r, b_r, ln_w,
                          act_fn_name="gelu", use_layer_norm=False, row_tile=16)
    out2 = jax.block_until_ready(out2)
    ref2 = reference_residual_block(x2, w_h, b_h, w_o, b_o, w_r, b_r, ln_w,
                                    act_fn_name="gelu", use_layer_norm=False)
    assert out2.shape == (batch2, seq2, out_dim)
    assert jnp.allclose(out2, ref2, atol=1e-5, rtol=1e-5)

    # ---- Test 3: bf16 operands stream straight into the MXU (f32 accumulation) ----
    xb = x.astype(jnp.bfloat16)
    outb = residual_block(
        xb, w_h.astype(jnp.bfloat16), b_h.astype(jnp.bfloat16),
        w_o.astype(jnp.bfloat16), b_o.astype(jnp.bfloat16),
        w_r.astype(jnp.bfloat16), b_r.astype(jnp.bfloat16),
        ln_w.astype(jnp.bfloat16),
        act_fn_name="relu", use_layer_norm=True,
    )
    outb = jax.block_until_ready(outb)
    assert outb.shape == (batch, seq, out_dim)
    assert jnp.allclose(outb.astype(jnp.float32), ref, atol=2e-1, rtol=1e-1)

    print("KERNEL_OK")
</pallas_src>

<mosaic_0001>
module attributes {stable_mosaic.version = 11 : i64} {
  func.func @residual_block_kernel(%arg0: i32, %arg1: memref<8x32xf32, #tpu.memory_space<vmem>>, %arg2: memref<32x256xf32, #tpu.memory_space<vmem>>, %arg3: memref<1x256xf32, #tpu.memory_space<vmem>>, %arg4: memref<128x128xf32, #tpu.memory_space<vmem>>, %arg5: memref<1x128xf32, #tpu.memory_space<vmem>>, %arg6: memref<8x128xf32, #tpu.memory_space<vmem>>) attributes {dimension_semantics = [#tpu.dimension_semantics<parallel>], iteration_bounds = array<i64: 2>, scalar_prefetch = 0 : i64, scratch_operands = 0 : i64, tpu.core_type = #tpu.core_type<tc>, window_params = [{transform_indices = @transform_0, window_bounds = array<i64: 8, 32>}, {pipeline_mode = #tpu.pipeline_mode<synchronous>, transform_indices = @transform_1, window_bounds = array<i64: 32, 256>}, {pipeline_mode = #tpu.pipeline_mode<synchronous>, transform_indices = @transform_2, window_bounds = array<i64: 1, 256>}, {pipeline_mode = #tpu.pipeline_mode<synchronous>, transform_indices = @transform_3, window_bounds = array<i64: 128, 128>}, {pipeline_mode = #tpu.pipeline_mode<synchronous>, transform_indices = @transform_4, window_bounds = array<i64: 1, 128>}, {transform_indices = @transform_5, window_bounds = array<i64: 8, 128>}]} {
    %c0 = arith.constant 0 : index
    %c0_0 = arith.constant 0 : index
    %0 = vector.load %arg1[%c0, %c0_0] : memref<8x32xf32, #tpu.memory_space<vmem>>, vector<8x32xf32>
    %c0_1 = arith.constant 0 : index
    %c0_2 = arith.constant 0 : index
    %1 = vector.load %arg2[%c0_1, %c0_2] : memref<32x256xf32, #tpu.memory_space<vmem>>, vector<32x256xf32>
    %cst = arith.constant dense<0.000000e+00> : vector<8x256xf32>
    %2 = tpu.matmul %0, %1, %cst {dimension_numbers = #tpu.dot_dimension_numbers<[1], [0], [0], [1], [0, 0, 1, 1], [], []>} : vector<8x32xf32>, vector<32x256xf32>, vector<8x256xf32> -> vector<8x256xf32>
    %c0_3 = arith.constant 0 : index
    %c0_4 = arith.constant 0 : index
    %3 = vector.load %arg3[%c0_3, %c0_4] : memref<1x256xf32, #tpu.memory_space<vmem>>, vector<1x256xf32>
    %4 = vector.broadcast %3 : vector<1x256xf32> to vector<8x256xf32>
    %5 = arith.addf %2, %4 : vector<8x256xf32>
    %6 = vector.extract_strided_slice %5 {offsets = [0, 0], sizes = [8, 128], strides = [1, 1]} : vector<8x256xf32> to vector<8x128xf32>
    %cst_5 = arith.constant 0.000000e+00 : f32
    %7 = vector.broadcast %cst_5 : f32 to vector<8x128xf32>
    %8 = arith.maximumf %6, %7 : vector<8x128xf32>
    %9 = vector.extract_strided_slice %5 {offsets = [0, 128], sizes = [8, 128], strides = [1, 1]} : vector<8x256xf32> to vector<8x128xf32>
    %c0_6 = arith.constant 0 : index
    %c0_7 = arith.constant 0 : index
    %10 = vector.load %arg4[%c0_6, %c0_7] : memref<128x128xf32, #tpu.memory_space<vmem>>, vector<128x128xf32>
    %cst_8 = arith.constant dense<0.000000e+00> : vector<8x128xf32>
    %11 = tpu.matmul %8, %10, %cst_8 {dimension_numbers = #tpu.dot_dimension_numbers<[1], [0], [0], [1], [0, 0, 1, 1], [], []>} : vector<8x128xf32>, vector<128x128xf32>, vector<8x128xf32> -> vector<8x128xf32>
    %12 = arith.addf %11, %9 : vector<8x128xf32>
    %13 = arith.mulf %12, %12 : vector<8x128xf32>
    %cst_9 = arith.constant dense<0.000000e+00> : vector<8xf32>
    %14 = vector.multi_reduction <add>, %13, %cst_9 [1] : vector<8x128xf32> to vector<8xf32>
    %15 = vector.shape_cast %14 : vector<8xf32> to vector<8x1xf32>
    %cst_10 = arith.constant 3.125000e-02 : f32
    %16 = vector.broadcast %cst_10 : f32 to vector<8x1xf32>
    %17 = arith.mulf %15, %16 : vector<8x1xf32>
    %cst_11 = arith.constant 9.99999997E-7 : f32
    %18 = vector.broadcast %cst_11 : f32 to vector<8x1xf32>
    %19 = arith.addf %17, %18 : vector<8x1xf32>
    %20 = math.rsqrt %19 : vector<8x1xf32>
    %21 = vector.broadcast %20 : vector<8x1xf32> to vector<8x128xf32>
    %22 = arith.mulf %12, %21 : vector<8x128xf32>
    %c0_12 = arith.constant 0 : index
    %c0_13 = arith.constant 0 : index
    %23 = vector.load %arg5[%c0_12, %c0_13] : memref<1x128xf32, #tpu.memory_space<vmem>>, vector<1x128xf32>
    %24 = vector.broadcast %23 : vector<1x128xf32> to vector<8x128xf32>
    %25 = arith.mulf %22, %24 : vector<8x128xf32>
    %c0_14 = arith.constant 0 : index
    %c0_15 = arith.constant 0 : index
    %26 = vector.load %arg6[%c0_14, %c0_15] : memref<8x128xf32, #tpu.memory_space<vmem>>, vector<8x128xf32>
    tpu.vector_store %arg6[%c0_14, %c0_15], %25 {strides = array<i32>} : memref<8x128xf32, #tpu.memory_space<vmem>>, vector<8x128xf32>,
    return
  }
  func.func @transform_0(%arg0: i32) -> (i32, i32) {
    %c0_i32 = arith.constant 0 : i32
    %c0_i32_0 = arith.constant 0 : i32
    return %arg0, %c0_i32 : i32, i32
  }
  func.func @transform_1(%arg0: i32) -> (i32, i32) {
    %c0_i32 = arith.constant 0 : i32
    %c0_i32_0 = arith.constant 0 : i32
    %c0_i32_1 = arith.constant 0 : i32
    return %c0_i32, %c0_i32_0 : i32, i32
  }
  func.func @transform_2(%arg0: i32) -> (i32, i32) {
    %c0_i32 = arith.constant 0 : i32
    %c0_i32_0 = arith.constant 0 : i32
    %c0_i32_1 = arith.constant 0 : i32
    return %c0_i32, %c0_i32_0 : i32, i32
  }
  func.func @transform_3(%arg0: i32) -> (i32, i32) {
    %c0_i32 = arith.constant 0 : i32
    %c0_i32_0 = arith.constant 0 : i32
    %c0_i32_1 = arith.constant 0 : i32
    return %c0_i32, %c0_i32_0 : i32, i32
  }
  func.func @transform_4(%arg0: i32) -> (i32, i32) {
    %c0_i32 = arith.constant 0 : i32
    %c0_i32_0 = arith.constant 0 : i32
    %c0_i32_1 = arith.constant 0 : i32
    return %c0_i32, %c0_i32_0 : i32, i32
  }
  func.func @transform_5(%arg0: i32) -> (i32, i32) {
    %c0_i32 = arith.constant 0 : i32
    %c0_i32_0 = arith.constant 0 : i32
    return %arg0, %c0_i32 : i32, i32
  }
}

module attributes {stable_mosaic.version = 11 : i64} {
  func.func @residual_block_kernel(%arg0: i32, %arg1: memref<8x32xf32, #tpu.memory_space<vmem>>, %arg2: memref<32x256xf32, #tpu.memory_space<vmem>>, %arg3: memref<1x256xf32, #tpu.memory_space<vmem>>, %arg4: memref<128x128xf32, #tpu.memory_space<vmem>>, %arg5: memref<1x128xf32, #tpu.memory_space<vmem>>, %arg6: memref<8x128xf32, #tpu.memory_space<vmem>>) attributes {dimension_semantics = [#tpu.dimension_semantics<parallel>], iteration_bounds = array<i64: 2>, scalar_prefetch = 0 : i64, scratch_operands = 0 : i64, tpu.core_type = #tpu.core_type<tc>, window_params = [{transform_indices = @transform_0, window_bounds = array<i64: 8, 32>}, {pipeline_mode = #tpu.pipeline_mode<synchronous>, transform_indices = @transform_1, window_bounds = array<i64: 32, 256>}, {pipeline_mode = #tpu.pipeline_mode<synchronous>, transform_indices = @transform_2, window_bounds = array<i64: 1, 256>}, {pipeline_mode = #tpu.pipeline_mode<synchronous>, transform_indices = @transform_3, window_bounds = array<i64: 128, 128>}, {pipeline_mode = #tpu.pipeline_mode<synchronous>, transform_indices = @transform_4, window_bounds = array<i64: 1, 128>}, {transform_indices = @transform_5, window_bounds = array<i64: 8, 128>}]} {
    %c0 = arith.constant 0 : index
    %c0_0 = arith.constant 0 : index
    %0 = vector.load %arg1[%c0, %c0_0] : memref<8x32xf32, #tpu.memory_space<vmem>>, vector<8x32xf32>
    %c0_1 = arith.constant 0 : index
    %c0_2 = arith.constant 0 : index
    %1 = vector.load %arg2[%c0_1, %c0_2] : memref<32x256xf32, #tpu.memory_space<vmem>>, vector<32x256xf32>
    %cst = arith.constant dense<0.000000e+00> : vector<8x256xf32>
    %2 = tpu.matmul %0, %1, %cst {dimension_numbers = #tpu.dot_dimension_numbers<[1], [0], [0], [1], [0, 0, 1, 1], [], []>} : vector<8x32xf32>, vector<32x256xf32>, vector<8x256xf32> -> vector<8x256xf32>
    %c0_3 = arith.constant 0 : index
    %c0_4 = arith.constant 0 : index
    %3 = vector.load %arg3[%c0_3, %c0_4] : memref<1x256xf32, #tpu.memory_space<vmem>>, vector<1x256xf32>
    %4 = vector.broadcast %3 : vector<1x256xf32> to vector<8x256xf32>
    %5 = arith.addf %2, %4 : vector<8x256xf32>
    %6 = vector.extract_strided_slice %5 {offsets = [0, 0], sizes = [8, 128], strides = [1, 1]} : vector<8x256xf32> to vector<8x128xf32>
    %cst_5 = arith.constant 0.000000e+00 : f32
    %7 = vector.broadcast %cst_5 : f32 to vector<8x128xf32>
    %8 = arith.maximumf %6, %7 : vector<8x128xf32>
    %9 = vector.extract_strided_slice %5 {offsets = [0, 128], sizes = [8, 128], strides = [1, 1]} : vector<8x256xf32> to vector<8x128xf32>
    %c0_6 = arith.constant 0 : index
    %c0_7 = arith.constant 0 : index
    %10 = vector.load %arg4[%c0_6, %c0_7] : memref<128x128xf32, #tpu.memory_space<vmem>>, vector<128x128xf32>
    %cst_8 = arith.constant dense<0.000000e+00> : vector<8x128xf32>
    %11 = tpu.matmul %8, %10, %cst_8 {dimension_numbers = #tpu.dot_dimension_numbers<[1], [0], [0], [1], [0, 0, 1, 1], [], []>} : vector<8x128xf32>, vector<128x128xf32>, vector<8x128xf32> -> vector<8x128xf32>
    %12 = arith.addf %11, %9 : vector<8x128xf32>
    %13 = arith.mulf %12, %12 : vector<8x128xf32>
    %cst_9 = arith.constant dense<0.000000e+00> : vector<8xf32>
    %14 = vector.multi_reduction <add>, %13, %cst_9 [1] : vector<8x128xf32> to vector<8xf32>
    %15 = vector.shape_cast %14 : vector<8xf32> to vector<8x1xf32>
    %cst_10 = arith.constant 3.125000e-02 : f32
    %16 = vector.broadcast %cst_10 : f32 to vector<8x1xf32>
    %17 = arith.mulf %15, %16 : vector<8x1xf32>
    %cst_11 = arith.constant 9.99999997E-7 : f32
    %18 = vector.broadcast %cst_11 : f32 to vector<8x1xf32>
    %19 = arith.addf %17, %18 : vector<8x1xf32>
    %20 = math.rsqrt %19 : vector<8x1xf32>
    %21 = vector.broadcast %20 : vector<8x1xf32> to vector<8x128xf32>
    %22 = arith.mulf %12, %21 : vector<8x128xf32>
    %c0_12 = arith.constant 0 : index
    %c0_13 = arith.constant 0 : index
    %23 = vector.load %arg5[%c0_12, %c0_13] : memref<1x128xf32, #tpu.memory_space<vmem>>, vector<1x128xf32>
    %24 = vector.broadcast %23 : vector<1x128xf32> to vector<8x128xf32>
    %25 = arith.mulf %22, %24 : vector<8x128xf32>
    %c0_14 = arith.constant 0 : index
    %c0_15 = arith.constant 0 : index
    %26 = vector.load %arg6[%c0_14, %c0_15] : memref<8x128xf32, #tpu.memory_space<vmem>>, vector<8x128xf32>
    tpu.vector_store %arg6[%c0_14, %c0_15], %25 {strides = array<i32>} : memref<8x128xf32, #tpu.memory_space<vmem>>, vector<8x128xf32>,
    return
  }
  func.func @transform_0(%arg0: i32) -> (i32, i32) {
    %c0_i32 = arith.constant 0 : i32
    %c0_i32_0 = arith.constant 0 : i32
    return %arg0, %c0_i32 : i32, i32
  }
  func.func @transform_1(%arg0: i32) -> (i32, i32) {
    %c0_i32 = arith.constant 0 : i32
    %c0_i32_0 = arith.constant 0 : i32
    %c0_i32_1 = arith.constant 0 : i32
    return %c0_i32, %c0_i32_0 : i32, i32
  }
  func.func @transform_2(%arg0: i32) -> (i32, i32) {
    %c0_i32 = arith.constant 0 : i32
    %c0_i32_0 = arith.constant 0 : i32
    %c0_i32_1 = arith.constant 0 : i32
    return %c0_i32, %c0_i32_0 : i32, i32
  }
  func.func @transform_3(%arg0: i32) -> (i32, i32) {
    %c0_i32 = arith.constant 0 : i32
    %c0_i32_0 = arith.constant 0 : i32
    %c0_i32_1 = arith.constant 0 : i32
    return %c0_i32, %c0_i32_0 : i32, i32
  }
  func.func @transform_4(%arg0: i32) -> (i32, i32) {
    %c0_i32 = arith.constant 0 : i32
    %c0_i32_0 = arith.constant 0 : i32
    %c0_i32_1 = arith.constant 0 : i32
    return %c0_i32, %c0_i32_0 : i32, i32
  }
  func.func @transform_5(%arg0: i32) -> (i32, i32) {
    %c0_i32 = arith.constant 0 : i32
    %c0_i32_0 = arith.constant 0 : i32
    return %arg0, %c0_i32 : i32, i32
  }
}

</mosaic_0001>

<llo_original>
// kernel: tpu_custom_call.1
$region0: #{tpu_custom_call.1}
  #allocation0 [shape = 'u32[]', space=smem, size = 0x4, offset = 0x4, fixed_abs, tag = 'smem constant byte address 0x4 - core index']
  #allocation1 [shape = 'u32[144,128]{1,0:T(1,128)}', space=vmem, size = 0x12000, scoped, tag = 'internal scratch']
  %s0 = inlined_call_operand.hbm [shape: f32[16,32], index: 0, kind: input, shape index: {}]
  %s1 = inlined_call_operand.hbm [shape: f32[32,256], index: 1, kind: input, shape index: {}]
  %s2 = inlined_call_operand.vmem [shape: f32[1,256], index: 2, kind: input, shape index: {}]
  %s3 = inlined_call_operand.hbm [shape: f32[128,128], index: 3, kind: input, shape index: {}]
  %s4 = inlined_call_operand.vmem [shape: f32[1,128], index: 4, kind: input, shape index: {}]
  %s5 = inlined_call_operand.hbm [shape: f32[16,128], index: 5, kind: output, shape index: {}]
  %s6 = sld [smem:[#allocation0]]
  $region65: #{tpu_custom_call.1} parent=0
    _
  %s8 = ssub.s32 1, %s6
  %s9 = scalar_select 0, %s8, %s6
  $region1: #{tpu_custom_call.1} parent=0
    #allocation2 [shape = 'u8[8192]{0}', space=vmem, size = 0x2000, scoped, tag = 'input window, operand 0']
    #allocation3 [shape = 's32[2]{0}', space=sflag, size = 0x8, scoped, tag = 'scoped memory for tpu_custom_call.1']
    #allocation4 [shape = 's32[2]{0}', space=sflag, size = 0x8, scoped, tag = 'scoped memory for tpu_custom_call.1']
    #allocation5 [shape = 'u8[32768]{0}', space=vmem, size = 0x8000, scoped, tag = 'input window, operand 1, single buffered']
    #allocation6 [shape = 's32[1]{0}', space=sflag, size = 0x4, scoped, tag = 'scoped memory for tpu_custom_call.1']
    #allocation7 [shape = 'u8[65536]{0}', space=vmem, size = 0x10000, scoped, tag = 'input window, operand 3, single buffered']
    #allocation8 [shape = 'u8[8192]{0}', space=vmem, size = 0x2000, scoped, tag = 'output window, operand 0']
    %10 = vsyncpa [#allocation3], 0
    %s11 = scalar_lea.sflag [#allocation3], 1
    %12 = vsyncpa %s11, 0
    %13 = vsyncpa [#allocation6], 0
    %14 = vsyncpa [#allocation4], 0
    %s15 = scalar_lea.sflag [#allocation4], 1
    %16 = vsyncpa %s15, 0
    loop: start=0, step=1, limit=4
    $region2: #{tpu_custom_call.1} parent=1 // loop_pre_header
      _
    $region3: #{tpu_custom_call.1} parent=1 // loop_header
      %s18 = sphi 0, %s22
      %p19 = scmp.ge.s32.totalorder %s18, 4
      %s28 = sphi 0, %s30
      %s31 = sphi 0, %s28
      %s32 = sphi 0, %s31
      %s48 = sphi 0, %s32
      %s52 = sphi 0, %s52
      %s54 = sphi 0, %s52
      %s55 = sphi 0, %s54
      %s69 = sphi 0, %s55
      %s73 = sphi 0, %s73
      %s75 = sphi 0, %s73
      %s76 = sphi 0, %s75
      %s90 = sphi 0, %s76
      %s94 = sphi 0, %s94
      %s96 = sphi 0, %s94
      %s97 = sphi 0, %s96
      %s111 = sphi 0, %s97
      %s115 = sphi 0, %s115
      %s117 = sphi 0, %s115
      %s118 = sphi 0, %s117
      %s132 = sphi 0, %s118
      %s138 = sphi 0, %s140
      %s141 = sphi 0, %s138
      %s142 = sphi 0, %s141
      %s158 = sphi 0, %s142
    $region4: #{tpu_custom_call.1} parent=1 // loop_header_branch
      %21 = sbr.rel (%p19) target = $region8
    $region5: #{tpu_custom_call.1} parent=1 // loop_body
      %s23 = ssub.s32 %s18, 1
      %s24 = ssub.s32 %s18, 2
      %s25 = sadd.s32 %s18, 1
      %s26 = ssub.s32 %s18, %s25
      %p27 = scmp.eq.s32.totalorder %s26, 0
      %s29 = sadd.s32 %s28, 1
      %s30 = scalar_select %p27, %s28, %s29
      %p33 = pneg %p27
      %p34 = scmp.eq.s32.totalorder %s18, 1
      %p35 = por %p33, %p34
      %p36 = scmp.ne.s32.totalorder %s28, %s31
      %p37 = scmp.eq.s32.totalorder %s18, 0
      %p38 = por %p36, %p37
      %p39 = scmp.ne.s32.totalorder %s28, %s31
      %p40 = scmp.eq.s32.totalorder %s23, 1
      %p41 = por %p39, %p40
      %p42 = scmp.ne.s32.totalorder %s31, %s32
      %p43 = scmp.eq.s32.totalorder %s23, 0
      %p44 = por %p42, %p43
      %p45 = scmp.ne.s32.totalorder %s31, %s32
      %p46 = scmp.eq.s32.totalorder %s24, 1
      %p47 = por %p45, %p46
      %p49 = scmp.ne.s32.totalorder %s32, %s48
      %p50 = scmp.eq.s32.totalorder %s24, 0
      %p51 = por %p49, %p50
      %s53 = sadd.s32 %s52, 1
      %p56 = scmp.eq.s32.totalorder %s18, 1
      %p57 = scmp.ne.s32.totalorder %s52, %s54
      %p58 = scmp.eq.s32.totalorder %s18, 0
      %p59 = por %p57, %p58
      %p60 = scmp.ne.s32.totalorder %s52, %s54
      %p61 = scmp.eq.s32.totalorder %s23, 1
      %p62 = por %p60, %p61
      %p63 = scmp.ne.s32.totalorder %s54, %s55
      %p64 = scmp.eq.s32.totalorder %s23, 0
      %p65 = por %p63, %p64
      %p66 = scmp.ne.s32.totalorder %s54, %s55
      %p67 = scmp.eq.s32.totalorder %s24, 1
      %p68 = por %p66, %p67
      %p70 = scmp.ne.s32.totalorder %s55, %s69
      %p71 = scmp.eq.s32.totalorder %s24, 0
      %p72 = por %p70, %p71
      %s74 = sadd.s32 %s73, 1
      %p77 = scmp.eq.s32.totalorder %s18, 1
      %p78 = scmp.ne.s32.totalorder %s73, %s75
      %p79 = scmp.eq.s32.totalorder %s18, 0
      %p80 = por %p78, %p79
      %p81 = scmp.ne.s32.totalorder %s73, %s75
      %p82 = scmp.eq.s32.totalorder %s23, 1
      %p83 = por %p81, %p82
      %p84 = scmp.ne.s32.totalorder %s75, %s76
      %p85 = scmp.eq.s32.totalorder %s23, 0
      %p86 = por %p84, %p85
      %p87 = scmp.ne.s32.totalorder %s75, %s76
      %p88 = scmp.eq.s32.totalorder %s24, 1
      %p89 = por %p87, %p88
      %p91 = scmp.ne.s32.totalorder %s76, %s90
      %p92 = scmp.eq.s32.totalorder %s24, 0
      %p93 = por %p91, %p92
      %s95 = sadd.s32 %s94, 1
      %p98 = scmp.eq.s32.totalorder %s18, 1
      %p99 = scmp.ne.s32.totalorder %s94, %s96
      %p100 = scmp.eq.s32.totalorder %s18, 0
      %p101 = por %p99, %p100
      %p102 = scmp.ne.s32.totalorder %s94, %s96
      %p103 = scmp.eq.s32.totalorder %s23, 1
      %p104 = por %p102, %p103
      %p105 = scmp.ne.s32.totalorder %s96, %s97
      %p106 = scmp.eq.s32.totalorder %s23, 0
      %p107 = por %p105, %p106
      %p108 = scmp.ne.s32.totalorder %s96, %s97
      %p109 = scmp.eq.s32.totalorder %s24, 1
      %p110 = por %p108, %p109
      %p112 = scmp.ne.s32.totalorder %s97, %s111
      %p113 = scmp.eq.s32.totalorder %s24, 0
      %p114 = por %p112, %p113
      %s116 = sadd.s32 %s115, 1
      %p119 = scmp.eq.s32.totalorder %s18, 1
      %p120 = scmp.ne.s32.totalorder %s115, %s117
      %p121 = scmp.eq.s32.totalorder %s18, 0
      %p122 = por %p120, %p121
      %p123 = scmp.ne.s32.totalorder %s115, %s117
      %p124 = scmp.eq.s32.totalorder %s23, 1
      %p125 = por %p123, %p124
      %p126 = scmp.ne.s32.totalorder %s117, %s118
      %p127 = scmp.eq.s32.totalorder %s23, 0
      %p128 = por %p126, %p127
      %p129 = scmp.ne.s32.totalorder %s117, %s118
      %p130 = scmp.eq.s32.totalorder %s24, 1
      %p131 = por %p129, %p130
      %p133 = scmp.ne.s32.totalorder %s118, %s132
      %p134 = scmp.eq.s32.totalorder %s24, 0
      %p135 = por %p133, %p134
      %s136 = ssub.s32 %s18, %s25
      %p137 = scmp.eq.s32.totalorder %s136, 0
      %s139 = sadd.s32 %s138, 1
      %s140 = scalar_select %p137, %s138, %s139
      %p143 = pneg %p137
      %p144 = scmp.eq.s32.totalorder %s18, 1
      %p145 = por %p143, %p144
      %p146 = scmp.ne.s32.totalorder %s138, %s141
      %p147 = scmp.eq.s32.totalorder %s18, 0
      %p148 = por %p146, %p147
      %p149 = scmp.ne.s32.totalorder %s138, %s141
      %p150 = scmp.eq.s32.totalorder %s23, 1
      %p151 = por %p149, %p150
      %p152 = scmp.ne.s32.totalorder %s141, %s142
      %p153 = scmp.eq.s32.totalorder %s23, 0
      %p154 = por %p152, %p153
      %p155 = scmp.ne.s32.totalorder %s141, %s142
      %p156 = scmp.eq.s32.totalorder %s24, 1
      %p157 = por %p155, %p156
      %p159 = scmp.ne.s32.totalorder %s142, %s158
      %p160 = scmp.eq.s32.totalorder %s24, 0
      %p161 = por %p159, %p160
      %p162 = scmp.le.s32.totalorder 1, %s18
      %p163 = scmp.lt.s32.totalorder %s18, 3
      %p164 = pnand %p162, %p163
      %p165 = pneg %p164
      // Predicated region
      $region9: #{tpu_custom_call.1} parent=5 // pred_check
        _
      $region10: #{tpu_custom_call.1} parent=5 // pred_check_branch
        %167 = sbr.rel (%p164) target = $region12
      $region11: #{tpu_custom_call.1} parent=5 // pred_region
        %s168 = ssub.s32 %s18, 1
        // Predicated region
        $region13: #{tpu_custom_call.1} parent=11 // pred_check
          %p169 = pneg %p65
        $region14: #{tpu_custom_call.1} parent=11 // pred_check_branch
          %171 = sbr.rel (%p169) target = $region16
        $region15: #{tpu_custom_call.1} parent=11 // pred_region
          %s173 = ssub.s32 1024, 1024
          %174 = vsyncadd [#allocation6], %s173
          %s175 = sshll.u32 [#allocation5], 4
          %s176 = int_to_ptr.vmem [resolvable:$true] %s175
          %181 = dma.hbm_to_vmem [thread:$0]  %s1, 1024, %s176, [#allocation6], 256, 256, 16
        $region16: #{tpu_custom_call.1} parent=11 // pred_fallthru
          _
        // Predicated region
        $region17: #{tpu_custom_call.1} parent=11 // pred_check
          %p182 = pneg %p86
        $region18: #{tpu_custom_call.1} parent=11 // pred_check_branch
          %184 = sbr.rel (%p182) target = $region20
        $region19: #{tpu_custom_call.1} parent=11 // pred_region
          _
        $region20: #{tpu_custom_call.1} parent=11 // pred_fallthru
          _
        // Predicated region
        $region21: #{tpu_custom_call.1} parent=11 // pred_check
          %p185 = pneg %p107
        $region22: #{tpu_custom_call.1} parent=11 // pred_check_branch
          %187 = sbr.rel (%p185) target = $region24
        $region23: #{tpu_custom_call.1} parent=11 // pred_region
          %s189 = ssub.s32 2048, 2048
          %190 = vsyncadd [#allocation6], %s189
          %s191 = sshll.u32 [#allocation7], 4
          %s192 = int_to_ptr.vmem [resolvable:$true] %s191
          %197 = dma.hbm_to_vmem [thread:$0]  %s3, 2048, %s192, [#allocation6], 128, 128, 8
        $region24: #{tpu_custom_call.1} parent=11 // pred_fallthru
          _
        // Predicated region
        $region25: #{tpu_custom_call.1} parent=11 // pred_check
          %p198 = pneg %p128
        $region26: #{tpu_custom_call.1} parent=11 // pred_check_branch
          %200 = sbr.rel (%p198) target = $region28
        $region27: #{tpu_custom_call.1} parent=11 // pred_region
          _
        $region28: #{tpu_custom_call.1} parent=11 // pred_fallthru
          _
      $region12: #{tpu_custom_call.1} parent=5 // pred_fallthru
        _
      %p201 = scmp.lt.s32.totalorder %s18, 2
      // Predicated region
      $region29: #{tpu_custom_call.1} parent=5 // pred_check
        %p202 = pneg %p201
      $region30: #{tpu_custom_call.1} parent=5 // pred_check_branch
        %204 = sbr.rel (%p202) target = $region32
      $region31: #{tpu_custom_call.1} parent=5 // pred_region
        // Predicated region
        $region33: #{tpu_custom_call.1} parent=31 // pred_check
          %p205 = pneg %p38
        $region34: #{tpu_custom_call.1} parent=31 // pred_check_branch
          %207 = sbr.rel (%p205) target = $region36
        $region35: #{tpu_custom_call.1} parent=31 // pred_region
          %s208 = sand.u32 %s28, 1
          %s209 = scalar_lea.sflag [#allocation3], %s208
          %s210 = sand.u32 %s28, 1
          %s211 = smul.addr %s210, 8
          %s212 = scalar_lea.vmem [#allocation2], %s211
          %s214 = ssub.s32 128, 128
          %215 = vsyncadd %s209, %s214
          %s216 = smul.addr %s18, 128
          %s217 = scalar_lea.hbm %s0, %s216
          %s219 = sshll.u32 %s212, 4
          %s220 = int_to_ptr.vmem [resolvable:$true] %s219
          %222 = dma.hbm_to_vmem [thread:$0]  %s217, 128, %s220, %s209
        $region36: #{tpu_custom_call.1} parent=31 // pred_fallthru
          _
      $region32: #{tpu_custom_call.1} parent=5 // pred_fallthru
        _
      %p223 = scmp.le.s32.totalorder 1, %s18
      %p224 = scmp.lt.s32.totalorder %s18, 3
      %p225 = pnand %p223, %p224
      %p226 = pneg %p225
      // Predicated region
      $region37: #{tpu_custom_call.1} parent=5 // pred_check
        _
      $region38: #{tpu_custom_call.1} parent=5 // pred_check_branch
        %228 = sbr.rel (%p225) target = $region40
      $region39: #{tpu_custom_call.1} parent=5 // pred_region
        %s229 = ssub.s32 %s18, 1
        %s230 = sand.u32 %s31, 1
        %s231 = scalar_lea.sflag [#allocation3], %s230
        %s232 = sand.u32 %s31, 1
        %s233 = smul.addr %s232, 8
        %s234 = scalar_lea.vmem [#allocation2], %s233
        // Predicated region
        $region41: #{tpu_custom_call.1} parent=39 // pred_check
          %p235 = pneg %p44
        $region42: #{tpu_custom_call.1} parent=39 // pred_check_branch
          %237 = sbr.rel (%p235) target = $region44
        $region43: #{tpu_custom_call.1} parent=39 // pred_region
          %238 = dma.done %s231, 128
        $region44: #{tpu_custom_call.1} parent=39 // pred_fallthru
          _
        // Predicated region
        $region45: #{tpu_custom_call.1} parent=39 // pred_check
          %p239 = pneg %p65
        $region46: #{tpu_custom_call.1} parent=39 // pred_check_branch
          %241 = sbr.rel (%p239) target = $region48
        $region47: #{tpu_custom_call.1} parent=39 // pred_region
          %242 = dma.done [#allocation6], 1024
        $region48: #{tpu_custom_call.1} parent=39 // pred_fallthru
          _
        // Predicated region
        $region49: #{tpu_custom_call.1} parent=39 // pred_check
          %p243 = pneg %p107
        $region50: #{tpu_custom_call.1} parent=39 // pred_check_branch
          %245 = sbr.rel (%p243) target = $region52
        $region51: #{tpu_custom_call.1} parent=39 // pred_region
          %246 = dma.done [#allocation6], 2048
        $region52: #{tpu_custom_call.1} parent=39 // pred_fallthru
          _
        %s247 = sand.u32 %s31, 1
        %s248 = scalar_lea.sflag [#allocation3], %s247
        %s249 = sand.u32 %s31, 1
        %s250 = smul.addr %s249, 8
        %s251 = scalar_lea.vmem [#allocation2], %s250
        %p252 = pneg %p44
        %p253 = pneg %p41
        %p254 = pneg %p65
        %p255 = pneg %p62
        %p256 = pneg %p86
        %p257 = pneg %p83
        %p258 = pneg %p107
        %p259 = pneg %p104
        %p260 = pneg %p128
        %p261 = pneg %p125
        %p262 = pneg %p154
        %p263 = pneg %p151
        %s264 = sand.u32 %s141, 1
        %s265 = scalar_lea.sflag [#allocation4], %s264
        %s266 = sand.u32 %s141, 1
        %s267 = smul.addr %s266, 8
        %s268 = scalar_lea.vmem [#allocation8], %s267
        %v269 = vld [vmem:[%s234] sm:$0xff]
        %v270 = vld [vmem:[#allocation5] sm:$0xff]
        %v271 = vld [vmem:[#allocation5 + $0x8] sm:$0xff]
        %v272 = vld [vmem:[#allocation5 + $0x10] sm:$0xff]
        %v273 = vld [vmem:[#allocation5 + $0x18] sm:$0xff]
        %v274 = vld [vmem:[#allocation5 + $0x20] sm:$0xff]
        %v275 = vld [vmem:[#allocation5 + $0x28] sm:$0xff]
        %v276 = vld [vmem:[#allocation5 + $0x30] sm:$0xff]
        %v277 = vld [vmem:[#allocation5 + $0x38] sm:$0xff]
        %v278 = vld [vmem:[%s2] sm:$0x3]
        %v280 = vlaneseq
        %v281 = vshrl.u32 %v280, 7
        %v282 = vsub.s32 0, %v281
        %v283 = vrot.slane %v278, %v282
        %v284 = vlaneseq
        %v285 = vshrl.u32 %v284, 7
        %v286 = vsub.s32 1, %v285
        %v287 = vrot.slane %v278, %v286
        %vm290 = vcmask 261120
        %v292 = vsel %vm290, %v269, 0
        %294 = vmatprep.subr.mxu0 0.0
        %295 = vmatpush1.msra.mxu0 0.0
        %296 = vmatprep.subr.mxu0 0.0
        %297 = vmatpush1.msra.mxu0 0.0
        %298 = vmatprep.subr.mxu0 0.0
        %299 = vmatpush1.msra.mxu0 0.0
        %300 = vmatprep.subr.mxu0 0.0
        %301 = vmatpush1.msra.mxu0 0.0
        %302 = vmatprep.subr.mxu0 0.0
        %303 = vmatpush1.msra.mxu0 0.0
        %304 = vmatprep.subr.mxu0 0.0
        %305 = vmatpush1.msra.mxu0 0.0
        %306 = vmatprep.subr.mxu0 0.0
        %307 = vmatpush1.msra.mxu0 0.0
        %308 = vmatprep.subr.mxu0 0.0
        %309 = vmatpush1.msra.mxu0 0.0
        %310 = vmatprep.subr.mxu0 0.0
        %311 = vmatpush1.msra.mxu0 0.0
        %312 = vmatprep.subr.mxu0 0.0
        %313 = vmatpush1.msra.mxu0 0.0
        %314 = vmatprep.subr.mxu0 0.0
        %315 = vmatpush1.msra.mxu0 0.0
        %316 = vmatprep.subr.mxu0 0.0
        %317 = vmatpush1.msra.mxu0 0.0
        %318 = vmatprep.subr.mxu0 %v277
        %319 = vmatpush1.msra.mxu0 %v276
        %320 = vmatprep.subr.mxu0 %v275
        %321 = vmatpush1.msra.mxu0 %v274
        %322 = vmatprep.subr.mxu0 %v273
        %323 = vmatpush1.msra.mxu0 %v272
        %324 = vmatprep.subr.mxu0 %v271
        %325 = vmatpush1.msra.mxu0 %v270
        %326 = vmatprep.subr.mxu0 0.0
        %327 = vmatpush2.msra.mxu0 0.0
        %328 = vmatprep.subr.mxu0 0.0
        %329 = vmatpush2.msra.mxu0 0.0
        %330 = vmatprep.subr.mxu0 0.0
        %331 = vmatpush2.msra.mxu0 0.0
        %332 = vmatprep.subr.mxu0 0.0
        %333 = vmatpush2.msra.mxu0 0.0
        %334 = vmatprep.subr.mxu0 0.0
        %335 = vmatpush2.msra.mxu0 0.0
        %336 = vmatprep.subr.mxu0 0.0
        %337 = vmatpush2.msra.mxu0 0.0
        %338 = vmatprep.subr.mxu0 0.0
        %339 = vmatpush2.msra.mxu0 0.0
        %340 = vmatprep.subr.mxu0 0.0
        %341 = vmatpush2.msra.mxu0 0.0
        %342 = vmatprep.subr.mxu0 0.0
        %343 = vmatpush2.msra.mxu0 0.0
        %344 = vmatprep.subr.mxu0 0.0
        %345 = vmatpush2.msra.mxu0 0.0
        %346 = vmatprep.subr.mxu0 0.0
        %347 = vmatpush2.msra.mxu0 0.0
        %348 = vmatprep.subr.mxu0 0.0
        %349 = vmatpush2.msra.mxu0 0.0
        %350 = vmatprep.subr.mxu0 0.0
        %351 = vmatpush2.msra.mxu0 0.0
        %352 = vmatprep.subr.mxu0 0.0
        %353 = vmatpush2.msra.mxu0 0.0
        %354 = vmatprep.subr.mxu0 0.0
        %355 = vmatpush2.msra.mxu0 0.0
        %356 = vmatprep.subr.mxu0 0.0
        %357 = vmatpush2.msra.mxu0 0.0
        %358 = vmatprep.mubr.f32.mxu0 0.0
        %359 = vmatmul.mubr.f32.gmra.mxu0 %v292
        %v360 = vpop.f32.mrf.mxu0
        %v361 = vadd.f32 %v283, %v360
        %v362 = vpop.f32.mrf.mxu0
        %v363 = vadd.f32 %v287, %v362
        %364 = vdwg.mxu0
        %v365 = vmax.f32 %v361, 0.0
        %v366 = vld [vmem:[#allocation7] sm:$0xff]
        %v367 = vld [vmem:[#allocation7 + $0x8] sm:$0xff]
        %v368 = vld [vmem:[#allocation7 + $0x10] sm:$0xff]
        %v369 = vld [vmem:[#allocation7 + $0x18] sm:$0xff]
        %v370 = vld [vmem:[#allocation7 + $0x20] sm:$0xff]
        %v371 = vld [vmem:[#allocation7 + $0x28] sm:$0xff]
        %v372 = vld [vmem:[#allocation7 + $0x30] sm:$0xff]
        %v373 = vld [vmem:[#allocation7 + $0x38] sm:$0xff]
        %v374 = vld [vmem:[#allocation7 + $0x40] sm:$0xff]
        %v375 = vld [vmem:[#allocation7 + $0x48] sm:$0xff]
        %v376 = vld [vmem:[#allocation7 + $0x50] sm:$0xff]
        %v377 = vld [vmem:[#allocation7 + $0x58] sm:$0xff]
        %v378 = vld [vmem:[#allocation7 + $0x60] sm:$0xff]
        %v379 = vld [vmem:[#allocation7 + $0x68] sm:$0xff]
        %v380 = vld [vmem:[#allocation7 + $0x70] sm:$0xff]
        %v381 = vld [vmem:[#allocation7 + $0x78] sm:$0xff]
        %382 = vmatprep.subr.mxu0 0.0
        %383 = vmatpush1.msra.mxu0 %v381
        %384 = vmatprep.subr.mxu0 0.0
        %385 = vmatpush1.msra.mxu0 %v380
        %386 = vmatprep.subr.mxu0 0.0
        %387 = vmatpush1.msra.mxu0 %v379
        %388 = vmatprep.subr.mxu0 0.0
        %389 = vmatpush1.msra.mxu0 %v378
        %390 = vmatprep.subr.mxu0 0.0
        %391 = vmatpush1.msra.mxu0 %v377
        %392 = vmatprep.subr.mxu0 0.0
        %393 = vmatpush1.msra.mxu0 %v376
        %394 = vmatprep.subr.mxu0 0.0
        %395 = vmatpush1.msra.mxu0 %v375
        %396 = vmatprep.subr.mxu0 0.0
        %397 = vmatpush1.msra.mxu0 %v374
        %398 = vmatprep.subr.mxu0 0.0
        %399 = vmatpush1.msra.mxu0 %v373
        %400 = vmatprep.subr.mxu0 0.0
        %401 = vmatpush1.msra.mxu0 %v372
        %402 = vmatprep.subr.mxu0 0.0
        %403 = vmatpush1.msra.mxu0 %v371
        %404 = vmatprep.subr.mxu0 0.0
        %405 = vmatpush1.msra.mxu0 %v370
        %406 = vmatprep.subr.mxu0 0.0
        %407 = vmatpush1.msra.mxu0 %v369
        %408 = vmatprep.subr.mxu0 0.0
        %409 = vmatpush1.msra.mxu0 %v368
        %410 = vmatprep.subr.mxu0 0.0
        %411 = vmatpush1.msra.mxu0 %v367
        %412 = vmatprep.subr.mxu0 0.0
        %413 = vmatpush1.msra.mxu0 %v366
        %414 = vmatprep.subr.mxu0 0.0
        %415 = vmatpush2.msra.mxu0 0.0
        %416 = vmatprep.subr.mxu0 0.0
        %417 = vmatpush2.msra.mxu0 0.0
        %418 = vmatprep.subr.mxu0 0.0
        %419 = vmatpush2.msra.mxu0 0.0
        %420 = vmatprep.subr.mxu0 0.0
        %421 = vmatpush2.msra.mxu0 0.0
        %422 = vmatprep.subr.mxu0 0.0
        %423 = vmatpush2.msra.mxu0 0.0
        %424 = vmatprep.subr.mxu0 0.0
        %425 = vmatpush2.msra.mxu0 0.0
        %426 = vmatprep.subr.mxu0 0.0
        %427 = vmatpush2.msra.mxu0 0.0
        %428 = vmatprep.subr.mxu0 0.0
        %429 = vmatpush2.msra.mxu0 0.0
        %430 = vmatprep.subr.mxu0 0.0
        %431 = vmatpush2.msra.mxu0 0.0
        %432 = vmatprep.subr.mxu0 0.0
        %433 = vmatpush2.msra.mxu0 0.0
        %434 = vmatprep.subr.mxu0 0.0
        %435 = vmatpush2.msra.mxu0 0.0
        %436 = vmatprep.subr.mxu0 0.0
        %437 = vmatpush2.msra.mxu0 0.0
        %438 = vmatprep.subr.mxu0 0.0
        %439 = vmatpush2.msra.mxu0 0.0
        %440 = vmatprep.subr.mxu0 0.0
        %441 = vmatpush2.msra.mxu0 0.0
        %442 = vmatprep.subr.mxu0 0.0
        %443 = vmatpush2.msra.mxu0 0.0
        %444 = vmatprep.subr.mxu0 0.0
        %445 = vmatpush2.msra.mxu0 0.0
        %446 = vmatprep.mubr.f32.mxu0 0.0
        %447 = vmatmul.mubr.f32.gmra.mxu0 %v365
        %v448 = vpop.f32.mrf.mxu0
        %v449 = vadd.f32 %v363, %v448
        %v450 = vpop.f32.mrf.mxu0
        %451 = vdwg.mxu0
        %v452 = vmul.f32 %v449, %v449
        %453 = vadd.xlane.f32.xlu0 %v452
        %v454 = vpop.xlane.xlu0 %453
        %v455 = vmul.f32 %v454, 0.03125
        %v456 = vadd.f32 %v455, 1e-06
        %v457 = vrsqrt.pop %v456
        %v458 = vmul.f32 %v449, %v457
        %v459 = vld [vmem:[%s4] sm:$0x1]
        %v461 = vlaneseq
        %v462 = vshrl.u32 %v461, 7
        %v463 = vsub.s32 0, %v462
        %v464 = vrot.slane %v459, %v463
        %v466 = vmul.f32 %v458, %v464
        %467 = vst [vmem:[%s268] sm:$0xff] %v466
        %s468 = sand.u32 %s141, 1
        %s469 = scalar_lea.sflag [#allocation4], %s468
        %s470 = sand.u32 %s141, 1
        %s471 = smul.addr %s470, 8
        %s472 = scalar_lea.vmem [#allocation8], %s471
        // Predicated region
        $region53: #{tpu_custom_call.1} parent=39 // pred_check
          %p473 = pneg %p151
        $region54: #{tpu_custom_call.1} parent=39 // pred_check_branch
          %475 = sbr.rel (%p473) target = $region56
        $region55: #{tpu_custom_call.1} parent=39 // pred_region
          %s477 = ssub.s32 128, 128
          %478 = vsyncadd %s469, %s477
          %s479 = smul.addr %s23, 128
          %s480 = scalar_lea.hbm %s5, %s479
          %s482 = sshll.u32 %s472, 4
          %s483 = int_to_ptr.vmem [resolvable:$true] %s482
          %485 = dma.vmem_to_hbm [thread:$0]  %s483, 128, %s480, %s469
        $region56: #{tpu_custom_call.1} parent=39 // pred_fallthru
          _
      $region40: #{tpu_custom_call.1} parent=5 // pred_fallthru
        _
      %p486 = scmp.le.s32.totalorder 2, %s18
      // Predicated region
      $region57: #{tpu_custom_call.1} parent=5 // pred_check
        %p487 = pneg %p486
      $region58: #{tpu_custom_call.1} parent=5 // pred_check_branch
        %489 = sbr.rel (%p487) target = $region60
      $region59: #{tpu_custom_call.1} parent=5 // pred_region
        %s490 = ssub.s32 %s18, 2
        // Predicated region
        $region61: #{tpu_custom_call.1} parent=59 // pred_check
          %p491 = pneg %p157
        $region62: #{tpu_custom_call.1} parent=59 // pred_check_branch
          %493 = sbr.rel (%p491) target = $region64
        $region63: #{tpu_custom_call.1} parent=59 // pred_region
          %s494 = sand.u32 %s142, 1
          %s495 = scalar_lea.sflag [#allocation4], %s494
          %s496 = sand.u32 %s142, 1
          %s497 = smul.addr %s496, 8
          %s498 = scalar_lea.vmem [#allocation8], %s497
          %499 = dma.done %s495, 128
        $region64: #{tpu_custom_call.1} parent=59 // pred_fallthru
          _
      $region60: #{tpu_custom_call.1} parent=5 // pred_fallthru
        _
    $region6: #{tpu_custom_call.1} parent=1 // loop_footer
      %s22 = sadd.s32 1, %s18
    $region7: #{tpu_custom_call.1} parent=1 // loop_footer_branch
      %17 = sbr.rel target = $region3
    $region8: #{tpu_custom_call.1} parent=1 // loop_exit
      _
    %500 = vsyncpa [#allocation3], 1
    %s501 = scalar_lea.sflag [#allocation3], 1
    %502 = vsyncpa %s501, 1
    %503 = vsyncpa [#allocation6], 1
    %504 = vsyncpa [#allocation4], 1
    %s505 = scalar_lea.sflag [#allocation4], 1
    %506 = vsyncpa %s505, 1

// kernel: tpu_custom_call.1
$region0: #{tpu_custom_call.1}
  #allocation0 [shape = 'u32[]', space=smem, size = 0x4, offset = 0x4, fixed_abs, tag = 'smem constant byte address 0x4 - core index']
  #allocation1 [shape = 'u32[144,128]{1,0:T(1,128)}', space=vmem, size = 0x12000, scoped, tag = 'internal scratch']
  %s0 = inlined_call_operand.hbm [shape: f32[16,32], index: 0, kind: input, shape index: {}]
  %s1 = inlined_call_operand.hbm [shape: f32[32,256], index: 1, kind: input, shape index: {}]
  %s2 = inlined_call_operand.vmem [shape: f32[1,256], index: 2, kind: input, shape index: {}]
  %s3 = inlined_call_operand.hbm [shape: f32[128,128], index: 3, kind: input, shape index: {}]
  %s4 = inlined_call_operand.vmem [shape: f32[1,128], index: 4, kind: input, shape index: {}]
  %s5 = inlined_call_operand.hbm [shape: f32[16,128], index: 5, kind: output, shape index: {}]
  %s6 = sld [smem:[#allocation0]]
  $region65: #{tpu_custom_call.1} parent=0
    _
  %s8 = ssub.s32 1, %s6
  %s9 = scalar_select 0, %s8, %s6
  $region1: #{tpu_custom_call.1} parent=0
    #allocation2 [shape = 'u8[8192]{0}', space=vmem, size = 0x2000, scoped, tag = 'input window, operand 0']
    #allocation3 [shape = 's32[2]{0}', space=sflag, size = 0x8, scoped, tag = 'scoped memory for tpu_custom_call.1']
    #allocation4 [shape = 's32[2]{0}', space=sflag, size = 0x8, scoped, tag = 'scoped memory for tpu_custom_call.1']
    #allocation5 [shape = 'u8[32768]{0}', space=vmem, size = 0x8000, scoped, tag = 'input window, operand 1, single buffered']
    #allocation6 [shape = 's32[1]{0}', space=sflag, size = 0x4, scoped, tag = 'scoped memory for tpu_custom_call.1']
    #allocation7 [shape = 'u8[65536]{0}', space=vmem, size = 0x10000, scoped, tag = 'input window, operand 3, single buffered']
    #allocation8 [shape = 'u8[8192]{0}', space=vmem, size = 0x2000, scoped, tag = 'output window, operand 0']
    %10 = vsyncpa [#allocation3], 0
    %s11 = scalar_lea.sflag [#allocation3], 1
    %12 = vsyncpa %s11, 0
    %13 = vsyncpa [#allocation6], 0
    %14 = vsyncpa [#allocation4], 0
    %s15 = scalar_lea.sflag [#allocation4], 1
    %16 = vsyncpa %s15, 0
    loop: start=0, step=1, limit=4
    $region2: #{tpu_custom_call.1} parent=1 // loop_pre_header
      _
    $region3: #{tpu_custom_call.1} parent=1 // loop_header
      %s18 = sphi 0, %s22
      %p19 = scmp.ge.s32.totalorder %s18, 4
      %s28 = sphi 0, %s30
      %s31 = sphi 0, %s28
      %s32 = sphi 0, %s31
      %s48 = sphi 0, %s32
      %s52 = sphi 0, %s52
      %s54 = sphi 0, %s52
      %s55 = sphi 0, %s54
      %s69 = sphi 0, %s55
      %s73 = sphi 0, %s73
      %s75 = sphi 0, %s73
      %s76 = sphi 0, %s75
      %s90 = sphi 0, %s76
      %s94 = sphi 0, %s94
      %s96 = sphi 0, %s94
      %s97 = sphi 0, %s96
      %s111 = sphi 0, %s97
      %s115 = sphi 0, %s115
      %s117 = sphi 0, %s115
      %s118 = sphi 0, %s117
      %s132 = sphi 0, %s118
      %s138 = sphi 0, %s140
      %s141 = sphi 0, %s138
      %s142 = sphi 0, %s141
      %s158 = sphi 0, %s142
    $region4: #{tpu_custom_call.1} parent=1 // loop_header_branch
      %21 = sbr.rel (%p19) target = $region8
    $region5: #{tpu_custom_call.1} parent=1 // loop_body
      %s23 = ssub.s32 %s18, 1
      %s24 = ssub.s32 %s18, 2
      %s25 = sadd.s32 %s18, 1
      %s26 = ssub.s32 %s18, %s25
      %p27 = scmp.eq.s32.totalorder %s26, 0
      %s29 = sadd.s32 %s28, 1
      %s30 = scalar_select %p27, %s28, %s29
      %p33 = pneg %p27
      %p34 = scmp.eq.s32.totalorder %s18, 1
      %p35 = por %p33, %p34
      %p36 = scmp.ne.s32.totalorder %s28, %s31
      %p37 = scmp.eq.s32.totalorder %s18, 0
      %p38 = por %p36, %p37
      %p39 = scmp.ne.s32.totalorder %s28, %s31
      %p40 = scmp.eq.s32.totalorder %s23, 1
      %p41 = por %p39, %p40
      %p42 = scmp.ne.s32.totalorder %s31, %s32
      %p43 = scmp.eq.s32.totalorder %s23, 0
      %p44 = por %p42, %p43
      %p45 = scmp.ne.s32.totalorder %s31, %s32
      %p46 = scmp.eq.s32.totalorder %s24, 1
      %p47 = por %p45, %p46
      %p49 = scmp.ne.s32.totalorder %s32, %s48
      %p50 = scmp.eq.s32.totalorder %s24, 0
      %p51 = por %p49, %p50
      %s53 = sadd.s32 %s52, 1
      %p56 = scmp.eq.s32.totalorder %s18, 1
      %p57 = scmp.ne.s32.totalorder %s52, %s54
      %p58 = scmp.eq.s32.totalorder %s18, 0
      %p59 = por %p57, %p58
      %p60 = scmp.ne.s32.totalorder %s52, %s54
      %p61 = scmp.eq.s32.totalorder %s23, 1
      %p62 = por %p60, %p61
      %p63 = scmp.ne.s32.totalorder %s54, %s55
      %p64 = scmp.eq.s32.totalorder %s23, 0
      %p65 = por %p63, %p64
      %p66 = scmp.ne.s32.totalorder %s54, %s55
      %p67 = scmp.eq.s32.totalorder %s24, 1
      %p68 = por %p66, %p67
      %p70 = scmp.ne.s32.totalorder %s55, %s69
      %p71 = scmp.eq.s32.totalorder %s24, 0
      %p72 = por %p70, %p71
      %s74 = sadd.s32 %s73, 1
      %p77 = scmp.eq.s32.totalorder %s18, 1
      %p78 = scmp.ne.s32.totalorder %s73, %s75
      %p79 = scmp.eq.s32.totalorder %s18, 0
      %p80 = por %p78, %p79
      %p81 = scmp.ne.s32.totalorder %s73, %s75
      %p82 = scmp.eq.s32.totalorder %s23, 1
      %p83 = por %p81, %p82
      %p84 = scmp.ne.s32.totalorder %s75, %s76
      %p85 = scmp.eq.s32.totalorder %s23, 0
      %p86 = por %p84, %p85
      %p87 = scmp.ne.s32.totalorder %s75, %s76
      %p88 = scmp.eq.s32.totalorder %s24, 1
      %p89 = por %p87, %p88
      %p91 = scmp.ne.s32.totalorder %s76, %s90
      %p92 = scmp.eq.s32.totalorder %s24, 0
      %p93 = por %p91, %p92
      %s95 = sadd.s32 %s94, 1
      %p98 = scmp.eq.s32.totalorder %s18, 1
      %p99 = scmp.ne.s32.totalorder %s94, %s96
      %p100 = scmp.eq.s32.totalorder %s18, 0
      %p101 = por %p99, %p100
      %p102 = scmp.ne.s32.totalorder %s94, %s96
      %p103 = scmp.eq.s32.totalorder %s23, 1
      %p104 = por %p102, %p103
      %p105 = scmp.ne.s32.totalorder %s96, %s97
      %p106 = scmp.eq.s32.totalorder %s23, 0
      %p107 = por %p105, %p106
      %p108 = scmp.ne.s32.totalorder %s96, %s97
      %p109 = scmp.eq.s32.totalorder %s24, 1
      %p110 = por %p108, %p109
      %p112 = scmp.ne.s32.totalorder %s97, %s111
      %p113 = scmp.eq.s32.totalorder %s24, 0
      %p114 = por %p112, %p113
      %s116 = sadd.s32 %s115, 1
      %p119 = scmp.eq.s32.totalorder %s18, 1
      %p120 = scmp.ne.s32.totalorder %s115, %s117
      %p121 = scmp.eq.s32.totalorder %s18, 0
      %p122 = por %p120, %p121
      %p123 = scmp.ne.s32.totalorder %s115, %s117
      %p124 = scmp.eq.s32.totalorder %s23, 1
      %p125 = por %p123, %p124
      %p126 = scmp.ne.s32.totalorder %s117, %s118
      %p127 = scmp.eq.s32.totalorder %s23, 0
      %p128 = por %p126, %p127
      %p129 = scmp.ne.s32.totalorder %s117, %s118
      %p130 = scmp.eq.s32.totalorder %s24, 1
      %p131 = por %p129, %p130
      %p133 = scmp.ne.s32.totalorder %s118, %s132
      %p134 = scmp.eq.s32.totalorder %s24, 0
      %p135 = por %p133, %p134
      %s136 = ssub.s32 %s18, %s25
      %p137 = scmp.eq.s32.totalorder %s136, 0
      %s139 = sadd.s32 %s138, 1
      %s140 = scalar_select %p137, %s138, %s139
      %p143 = pneg %p137
      %p144 = scmp.eq.s32.totalorder %s18, 1
      %p145 = por %p143, %p144
      %p146 = scmp.ne.s32.totalorder %s138, %s141
      %p147 = scmp.eq.s32.totalorder %s18, 0
      %p148 = por %p146, %p147
      %p149 = scmp.ne.s32.totalorder %s138, %s141
      %p150 = scmp.eq.s32.totalorder %s23, 1
      %p151 = por %p149, %p150
      %p152 = scmp.ne.s32.totalorder %s141, %s142
      %p153 = scmp.eq.s32.totalorder %s23, 0
      %p154 = por %p152, %p153
      %p155 = scmp.ne.s32.totalorder %s141, %s142
      %p156 = scmp.eq.s32.totalorder %s24, 1
      %p157 = por %p155, %p156
      %p159 = scmp.ne.s32.totalorder %s142, %s158
      %p160 = scmp.eq.s32.totalorder %s24, 0
      %p161 = por %p159, %p160
      %p162 = scmp.le.s32.totalorder 1, %s18
      %p163 = scmp.lt.s32.totalorder %s18, 3
      %p164 = pnand %p162, %p163
      %p165 = pneg %p164
      // Predicated region
      $region9: #{tpu_custom_call.1} parent=5 // pred_check
        _
      $region10: #{tpu_custom_call.1} parent=5 // pred_check_branch
        %167 = sbr.rel (%p164) target = $region12
      $region11: #{tpu_custom_call.1} parent=5 // pred_region
        %s168 = ssub.s32 %s18, 1
        // Predicated region
        $region13: #{tpu_custom_call.1} parent=11 // pred_check
          %p169 = pneg %p65
        $region14: #{tpu_custom_call.1} parent=11 // pred_check_branch
          %171 = sbr.rel (%p169) target = $region16
        $region15: #{tpu_custom_call.1} parent=11 // pred_region
          %s173 = ssub.s32 1024, 1024
          %174 = vsyncadd [#allocation6], %s173
          %s175 = sshll.u32 [#allocation5], 4
          %s176 = int_to_ptr.vmem [resolvable:$true] %s175
          %181 = dma.hbm_to_vmem [thread:$0]  %s1, 1024, %s176, [#allocation6], 256, 256, 16
        $region16: #{tpu_custom_call.1} parent=11 // pred_fallthru
          _
        // Predicated region
        $region17: #{tpu_custom_call.1} parent=11 // pred_check
          %p182 = pneg %p86
        $region18: #{tpu_custom_call.1} parent=11 // pred_check_branch
          %184 = sbr.rel (%p182) target = $region20
        $region19: #{tpu_custom_call.1} parent=11 // pred_region
          _
        $region20: #{tpu_custom_call.1} parent=11 // pred_fallthru
          _
        // Predicated region
        $region21: #{tpu_custom_call.1} parent=11 // pred_check
          %p185 = pneg %p107
        $region22: #{tpu_custom_call.1} parent=11 // pred_check_branch
          %187 = sbr.rel (%p185) target = $region24
        $region23: #{tpu_custom_call.1} parent=11 // pred_region
          %s189 = ssub.s32 2048, 2048
          %190 = vsyncadd [#allocation6], %s189
          %s191 = sshll.u32 [#allocation7], 4
          %s192 = int_to_ptr.vmem [resolvable:$true] %s191
          %197 = dma.hbm_to_vmem [thread:$0]  %s3, 2048, %s192, [#allocation6], 128, 128, 8
        $region24: #{tpu_custom_call.1} parent=11 // pred_fallthru
          _
        // Predicated region
        $region25: #{tpu_custom_call.1} parent=11 // pred_check
          %p198 = pneg %p128
        $region26: #{tpu_custom_call.1} parent=11 // pred_check_branch
          %200 = sbr.rel (%p198) target = $region28
        $region27: #{tpu_custom_call.1} parent=11 // pred_region
          _
        $region28: #{tpu_custom_call.1} parent=11 // pred_fallthru
          _
      $region12: #{tpu_custom_call.1} parent=5 // pred_fallthru
        _
      %p201 = scmp.lt.s32.totalorder %s18, 2
      // Predicated region
      $region29: #{tpu_custom_call.1} parent=5 // pred_check
        %p202 = pneg %p201
      $region30: #{tpu_custom_call.1} parent=5 // pred_check_branch
        %204 = sbr.rel (%p202) target = $region32
      $region31: #{tpu_custom_call.1} parent=5 // pred_region
        // Predicated region
        $region33: #{tpu_custom_call.1} parent=31 // pred_check
          %p205 = pneg %p38
        $region34: #{tpu_custom_call.1} parent=31 // pred_check_branch
          %207 = sbr.rel (%p205) target = $region36
        $region35: #{tpu_custom_call.1} parent=31 // pred_region
          %s208 = sand.u32 %s28, 1
          %s209 = scalar_lea.sflag [#allocation3], %s208
          %s210 = sand.u32 %s28, 1
          %s211 = smul.addr %s210, 8
          %s212 = scalar_lea.vmem [#allocation2], %s211
          %s214 = ssub.s32 128, 128
          %215 = vsyncadd %s209, %s214
          %s216 = smul.addr %s18, 128
          %s217 = scalar_lea.hbm %s0, %s216
          %s219 = sshll.u32 %s212, 4
          %s220 = int_to_ptr.vmem [resolvable:$true] %s219
          %222 = dma.hbm_to_vmem [thread:$0]  %s217, 128, %s220, %s209
        $region36: #{tpu_custom_call.1} parent=31 // pred_fallthru
          _
      $region32: #{tpu_custom_call.1} parent=5 // pred_fallthru
        _
      %p223 = scmp.le.s32.totalorder 1, %s18
      %p224 = scmp.lt.s32.totalorder %s18, 3
      %p225 = pnand %p223, %p224
      %p226 = pneg %p225
      // Predicated region
      $region37: #{tpu_custom_call.1} parent=5 // pred_check
        _
      $region38: #{tpu_custom_call.1} parent=5 // pred_check_branch
        %228 = sbr.rel (%p225) target = $region40
      $region39: #{tpu_custom_call.1} parent=5 // pred_region
        %s229 = ssub.s32 %s18, 1
        %s230 = sand.u32 %s31, 1
        %s231 = scalar_lea.sflag [#allocation3], %s230
        %s232 = sand.u32 %s31, 1
        %s233 = smul.addr %s232, 8
        %s234 = scalar_lea.vmem [#allocation2], %s233
        // Predicated region
        $region41: #{tpu_custom_call.1} parent=39 // pred_check
          %p235 = pneg %p44
        $region42: #{tpu_custom_call.1} parent=39 // pred_check_branch
          %237 = sbr.rel (%p235) target = $region44
        $region43: #{tpu_custom_call.1} parent=39 // pred_region
          %238 = dma.done %s231, 128
        $region44: #{tpu_custom_call.1} parent=39 // pred_fallthru
          _
        // Predicated region
        $region45: #{tpu_custom_call.1} parent=39 // pred_check
          %p239 = pneg %p65
        $region46: #{tpu_custom_call.1} parent=39 // pred_check_branch
          %241 = sbr.rel (%p239) target = $region48
        $region47: #{tpu_custom_call.1} parent=39 // pred_region
          %242 = dma.done [#allocation6], 1024
        $region48: #{tpu_custom_call.1} parent=39 // pred_fallthru
          _
        // Predicated region
        $region49: #{tpu_custom_call.1} parent=39 // pred_check
          %p243 = pneg %p107
        $region50: #{tpu_custom_call.1} parent=39 // pred_check_branch
          %245 = sbr.rel (%p243) target = $region52
        $region51: #{tpu_custom_call.1} parent=39 // pred_region
          %246 = dma.done [#allocation6], 2048
        $region52: #{tpu_custom_call.1} parent=39 // pred_fallthru
          _
        %s247 = sand.u32 %s31, 1
        %s248 = scalar_lea.sflag [#allocation3], %s247
        %s249 = sand.u32 %s31, 1
        %s250 = smul.addr %s249, 8
        %s251 = scalar_lea.vmem [#allocation2], %s250
        %p252 = pneg %p44
        %p253 = pneg %p41
        %p254 = pneg %p65
        %p255 = pneg %p62
        %p256 = pneg %p86
        %p257 = pneg %p83
        %p258 = pneg %p107
        %p259 = pneg %p104
        %p260 = pneg %p128
        %p261 = pneg %p125
        %p262 = pneg %p154
        %p263 = pneg %p151
        %s264 = sand.u32 %s141, 1
        %s265 = scalar_lea.sflag [#allocation4], %s264
        %s266 = sand.u32 %s141, 1
        %s267 = smul.addr %s266, 8
        %s268 = scalar_lea.vmem [#allocation8], %s267
        %v269 = vld [vmem:[%s234] sm:$0xff]
        %v270 = vld [vmem:[#allocation5] sm:$0xff]
        %v271 = vld [vmem:[#allocation5 + $0x8] sm:$0xff]
        %v272 = vld [vmem:[#allocation5 + $0x10] sm:$0xff]
        %v273 = vld [vmem:[#allocation5 + $0x18] sm:$0xff]
        %v274 = vld [vmem:[#allocation5 + $0x20] sm:$0xff]
        %v275 = vld [vmem:[#allocation5 + $0x28] sm:$0xff]
        %v276 = vld [vmem:[#allocation5 + $0x30] sm:$0xff]
        %v277 = vld [vmem:[#allocation5 + $0x38] sm:$0xff]
        %v278 = vld [vmem:[%s2] sm:$0x3]
        %v280 = vlaneseq
        %v281 = vshrl.u32 %v280, 7
        %v282 = vsub.s32 0, %v281
        %v283 = vrot.slane %v278, %v282
        %v284 = vlaneseq
        %v285 = vshrl.u32 %v284, 7
        %v286 = vsub.s32 1, %v285
        %v287 = vrot.slane %v278, %v286
        %vm290 = vcmask 261120
        %v292 = vsel %vm290, %v269, 0
        %294 = vmatprep.subr.mxu0 0.0
        %295 = vmatpush1.msra.mxu0 0.0
        %296 = vmatprep.subr.mxu0 0.0
        %297 = vmatpush1.msra.mxu0 0.0
        %298 = vmatprep.subr.mxu0 0.0
        %299 = vmatpush1.msra.mxu0 0.0
        %300 = vmatprep.subr.mxu0 0.0
        %301 = vmatpush1.msra.mxu0 0.0
        %302 = vmatprep.subr.mxu0 0.0
        %303 = vmatpush1.msra.mxu0 0.0
        %304 = vmatprep.subr.mxu0 0.0
        %305 = vmatpush1.msra.mxu0 0.0
        %306 = vmatprep.subr.mxu0 0.0
        %307 = vmatpush1.msra.mxu0 0.0
        %308 = vmatprep.subr.mxu0 0.0
        %309 = vmatpush1.msra.mxu0 0.0
        %310 = vmatprep.subr.mxu0 0.0
        %311 = vmatpush1.msra.mxu0 0.0
        %312 = vmatprep.subr.mxu0 0.0
        %313 = vmatpush1.msra.mxu0 0.0
        %314 = vmatprep.subr.mxu0 0.0
        %315 = vmatpush1.msra.mxu0 0.0
        %316 = vmatprep.subr.mxu0 0.0
        %317 = vmatpush1.msra.mxu0 0.0
        %318 = vmatprep.subr.mxu0 %v277
        %319 = vmatpush1.msra.mxu0 %v276
        %320 = vmatprep.subr.mxu0 %v275
        %321 = vmatpush1.msra.mxu0 %v274
        %322 = vmatprep.subr.mxu0 %v273
        %323 = vmatpush1.msra.mxu0 %v272
        %324 = vmatprep.subr.mxu0 %v271
        %325 = vmatpush1.msra.mxu0 %v270
        %326 = vmatprep.subr.mxu0 0.0
        %327 = vmatpush2.msra.mxu0 0.0
        %328 = vmatprep.subr.mxu0 0.0
        %329 = vmatpush2.msra.mxu0 0.0
        %330 = vmatprep.subr.mxu0 0.0
        %331 = vmatpush2.msra.mxu0 0.0
        %332 = vmatprep.subr.mxu0 0.0
        %333 = vmatpush2.msra.mxu0 0.0
        %334 = vmatprep.subr.mxu0 0.0
        %335 = vmatpush2.msra.mxu0 0.0
        %336 = vmatprep.subr.mxu0 0.0
        %337 = vmatpush2.msra.mxu0 0.0
        %338 = vmatprep.subr.mxu0 0.0
        %339 = vmatpush2.msra.mxu0 0.0
        %340 = vmatprep.subr.mxu0 0.0
        %341 = vmatpush2.msra.mxu0 0.0
        %342 = vmatprep.subr.mxu0 0.0
        %343 = vmatpush2.msra.mxu0 0.0
        %344 = vmatprep.subr.mxu0 0.0
        %345 = vmatpush2.msra.mxu0 0.0
        %346 = vmatprep.subr.mxu0 0.0
        %347 = vmatpush2.msra.mxu0 0.0
        %348 = vmatprep.subr.mxu0 0.0
        %349 = vmatpush2.msra.mxu0 0.0
        %350 = vmatprep.subr.mxu0 0.0
        %351 = vmatpush2.msra.mxu0 0.0
        %352 = vmatprep.subr.mxu0 0.0
        %353 = vmatpush2.msra.mxu0 0.0
        %354 = vmatprep.subr.mxu0 0.0
        %355 = vmatpush2.msra.mxu0 0.0
        %356 = vmatprep.subr.mxu0 0.0
        %357 = vmatpush2.msra.mxu0 0.0
        %358 = vmatprep.mubr.f32.mxu0 0.0
        %359 = vmatmul.mubr.f32.gmra.mxu0 %v292
        %v360 = vpop.f32.mrf.mxu0
        %v361 = vadd.f32 %v283, %v360
        %v362 = vpop.f32.mrf.mxu0
        %v363 = vadd.f32 %v287, %v362
        %364 = vdwg.mxu0
        %v365 = vmax.f32 %v361, 0.0
        %v366 = vld [vmem:[#allocation7] sm:$0xff]
        %v367 = vld [vmem:[#allocation7 + $0x8] sm:$0xff]
        %v368 = vld [vmem:[#allocation7 + $0x10] sm:$0xff]
        %v369 = vld [vmem:[#allocation7 + $0x18] sm:$0xff]
        %v370 = vld [vmem:[#allocation7 + $0x20] sm:$0xff]
        %v371 = vld [vmem:[#allocation7 + $0x28] sm:$0xff]
        %v372 = vld [vmem:[#allocation7 + $0x30] sm:$0xff]
        %v373 = vld [vmem:[#allocation7 + $0x38] sm:$0xff]
        %v374 = vld [vmem:[#allocation7 + $0x40] sm:$0xff]
        %v375 = vld [vmem:[#allocation7 + $0x48] sm:$0xff]
        %v376 = vld [vmem:[#allocation7 + $0x50] sm:$0xff]
        %v377 = vld [vmem:[#allocation7 + $0x58] sm:$0xff]
        %v378 = vld [vmem:[#allocation7 + $0x60] sm:$0xff]
        %v379 = vld [vmem:[#allocation7 + $0x68] sm:$0xff]
        %v380 = vld [vmem:[#allocation7 + $0x70] sm:$0xff]
        %v381 = vld [vmem:[#allocation7 + $0x78] sm:$0xff]
        %382 = vmatprep.subr.mxu0 0.0
        %383 = vmatpush1.msra.mxu0 %v381
        %384 = vmatprep.subr.mxu0 0.0
        %385 = vmatpush1.msra.mxu0 %v380
        %386 = vmatprep.subr.mxu0 0.0
        %387 = vmatpush1.msra.mxu0 %v379
        %388 = vmatprep.subr.mxu0 0.0
        %389 = vmatpush1.msra.mxu0 %v378
        %390 = vmatprep.subr.mxu0 0.0
        %391 = vmatpush1.msra.mxu0 %v377
        %392 = vmatprep.subr.mxu0 0.0
        %393 = vmatpush1.msra.mxu0 %v376
        %394 = vmatprep.subr.mxu0 0.0
        %395 = vmatpush1.msra.mxu0 %v375
        %396 = vmatprep.subr.mxu0 0.0
        %397 = vmatpush1.msra.mxu0 %v374
        %398 = vmatprep.subr.mxu0 0.0
        %399 = vmatpush1.msra.mxu0 %v373
        %400 = vmatprep.subr.mxu0 0.0
        %401 = vmatpush1.msra.mxu0 %v372
        %402 = vmatprep.subr.mxu0 0.0
        %403 = vmatpush1.msra.mxu0 %v371
        %404 = vmatprep.subr.mxu0 0.0
        %405 = vmatpush1.msra.mxu0 %v370
        %406 = vmatprep.subr.mxu0 0.0
        %407 = vmatpush1.msra.mxu0 %v369
        %408 = vmatprep.subr.mxu0 0.0
        %409 = vmatpush1.msra.mxu0 %v368
        %410 = vmatprep.subr.mxu0 0.0
        %411 = vmatpush1.msra.mxu0 %v367
        %412 = vmatprep.subr.mxu0 0.0
        %413 = vmatpush1.msra.mxu0 %v366
        %414 = vmatprep.subr.mxu0 0.0
        %415 = vmatpush2.msra.mxu0 0.0
        %416 = vmatprep.subr.mxu0 0.0
        %417 = vmatpush2.msra.mxu0 0.0
        %418 = vmatprep.subr.mxu0 0.0
        %419 = vmatpush2.msra.mxu0 0.0
        %420 = vmatprep.subr.mxu0 0.0
        %421 = vmatpush2.msra.mxu0 0.0
        %422 = vmatprep.subr.mxu0 0.0
        %423 = vmatpush2.msra.mxu0 0.0
        %424 = vmatprep.subr.mxu0 0.0
        %425 = vmatpush2.msra.mxu0 0.0
        %426 = vmatprep.subr.mxu0 0.0
        %427 = vmatpush2.msra.mxu0 0.0
        %428 = vmatprep.subr.mxu0 0.0
        %429 = vmatpush2.msra.mxu0 0.0
        %430 = vmatprep.subr.mxu0 0.0
        %431 = vmatpush2.msra.mxu0 0.0
        %432 = vmatprep.subr.mxu0 0.0
        %433 = vmatpush2.msra.mxu0 0.0
        %434 = vmatprep.subr.mxu0 0.0
        %435 = vmatpush2.msra.mxu0 0.0
        %436 = vmatprep.subr.mxu0 0.0
        %437 = vmatpush2.msra.mxu0 0.0
        %438 = vmatprep.subr.mxu0 0.0
        %439 = vmatpush2.msra.mxu0 0.0
        %440 = vmatprep.subr.mxu0 0.0
        %441 = vmatpush2.msra.mxu0 0.0
        %442 = vmatprep.subr.mxu0 0.0
        %443 = vmatpush2.msra.mxu0 0.0
        %444 = vmatprep.subr.mxu0 0.0
        %445 = vmatpush2.msra.mxu0 0.0
        %446 = vmatprep.mubr.f32.mxu0 0.0
        %447 = vmatmul.mubr.f32.gmra.mxu0 %v365
        %v448 = vpop.f32.mrf.mxu0
        %v449 = vadd.f32 %v363, %v448
        %v450 = vpop.f32.mrf.mxu0
        %451 = vdwg.mxu0
        %v452 = vmul.f32 %v449, %v449
        %453 = vadd.xlane.f32.xlu0 %v452
        %v454 = vpop.xlane.xlu0 %453
        %v455 = vmul.f32 %v454, 0.03125
        %v456 = vadd.f32 %v455, 1e-06
        %v457 = vrsqrt.pop %v456
        %v458 = vmul.f32 %v449, %v457
        %v459 = vld [vmem:[%s4] sm:$0x1]
        %v461 = vlaneseq
        %v462 = vshrl.u32 %v461, 7
        %v463 = vsub.s32 0, %v462
        %v464 = vrot.slane %v459, %v463
        %v466 = vmul.f32 %v458, %v464
        %467 = vst [vmem:[%s268] sm:$0xff] %v466
        %s468 = sand.u32 %s141, 1
        %s469 = scalar_lea.sflag [#allocation4], %s468
        %s470 = sand.u32 %s141, 1
        %s471 = smul.addr %s470, 8
        %s472 = scalar_lea.vmem [#allocation8], %s471
        // Predicated region
        $region53: #{tpu_custom_call.1} parent=39 // pred_check
          %p473 = pneg %p151
        $region54: #{tpu_custom_call.1} parent=39 // pred_check_branch
          %475 = sbr.rel (%p473) target = $region56
        $region55: #{tpu_custom_call.1} parent=39 // pred_region
          %s477 = ssub.s32 128, 128
          %478 = vsyncadd %s469, %s477
          %s479 = smul.addr %s23, 128
          %s480 = scalar_lea.hbm %s5, %s479
          %s482 = sshll.u32 %s472, 4
          %s483 = int_to_ptr.vmem [resolvable:$true] %s482
          %485 = dma.vmem_to_hbm [thread:$0]  %s483, 128, %s480, %s469
        $region56: #{tpu_custom_call.1} parent=39 // pred_fallthru
          _
      $region40: #{tpu_custom_call.1} parent=5 // pred_fallthru
        _
      %p486 = scmp.le.s32.totalorder 2, %s18
      // Predicated region
      $region57: #{tpu_custom_call.1} parent=5 // pred_check
        %p487 = pneg %p486
      $region58: #{tpu_custom_call.1} parent=5 // pred_check_branch
        %489 = sbr.rel (%p487) target = $region60
      $region59: #{tpu_custom_call.1} parent=5 // pred_region
        %s490 = ssub.s32 %s18, 2
        // Predicated region
        $region61: #{tpu_custom_call.1} parent=59 // pred_check
          %p491 = pneg %p157
        $region62: #{tpu_custom_call.1} parent=59 // pred_check_branch
          %493 = sbr.rel (%p491) target = $region64
        $region63: #{tpu_custom_call.1} parent=59 // pred_region
          %s494 = sand.u32 %s142, 1
          %s495 = scalar_lea.sflag [#allocation4], %s494
          %s496 = sand.u32 %s142, 1
          %s497 = smul.addr %s496, 8
          %s498 = scalar_lea.vmem [#allocation8], %s497
          %499 = dma.done %s495, 128
        $region64: #{tpu_custom_call.1} parent=59 // pred_fallthru
          _
      $region60: #{tpu_custom_call.1} parent=5 // pred_fallthru
        _
    $region6: #{tpu_custom_call.1} parent=1 // loop_footer
      %s22 = sadd.s32 1, %s18
    $region7: #{tpu_custom_call.1} parent=1 // loop_footer_branch
      %17 = sbr.rel target = $region3
    $region8: #{tpu_custom_call.1} parent=1 // loop_exit
      _
    %500 = vsyncpa [#allocation3], 1
    %s501 = scalar_lea.sflag [#allocation3], 1
    %502 = vsyncpa %s501, 1
    %503 = vsyncpa [#allocation6], 1
    %504 = vsyncpa [#allocation4], 1
    %s505 = scalar_lea.sflag [#allocation4], 1
    %506 = vsyncpa %s505, 1

</llo_original>
